<compile_context>
chip_gen: v6e
topology: v6e:2x2x1
jax: 0.10.0
libtpu: 0.0.40
codegen_flags: <defaults>
</compile_context>

<pallas_src>
import jax
import jax.numpy as jnp
from jax.experimental import pallas as pl
from jax.experimental.pallas import tpu as pltpu

H1, H2 = 128, 256  # hidden widths from the PyTorch module


def dqn_kernel(x_ref, w1_ref, b1_ref, w2_ref, b2_ref, w3_ref, b3_ref, o_ref):
    # In-kernel bf16 cast of x (avoids a separate XLA pass over x in HBM).
    x = x_ref[...].astype(jnp.bfloat16)
    # Layer 1: bf16 matmul on the MXU, f32 accumulation, bias + ReLU on VPU.
    h1 = jnp.dot(x, w1_ref[...], preferred_element_type=jnp.float32)
    h1 = jnp.maximum(h1 + b1_ref[...], 0.0).astype(jnp.bfloat16)
    # Layer 2
    h2 = jnp.dot(h1, w2_ref[...], preferred_element_type=jnp.float32)
    h2 = jnp.maximum(h2 + b2_ref[...], 0.0).astype(jnp.bfloat16)
    # Layer 3 -- output padded to 128 lanes; padded columns have zero weights
    # and bias = -1e30 (kept f32), so exp() of them is 0 and softmax is exact.
    logits = jnp.dot(h2, w3_ref[...], preferred_element_type=jnp.float32)
    logits = logits + b3_ref[...]
    # Numerically stable softmax over the (padded) last axis; EUP reciprocal.
    m = jnp.max(logits, axis=-1, keepdims=True)
    e = jnp.exp(logits - m)
    s = jnp.sum(e, axis=-1, keepdims=True)
    o_ref[...] = (e * pl.reciprocal(s, approx=True)).astype(o_ref.dtype)


def _round_up(n, m):
    return ((n + m - 1) // m) * m


def _choose_tb(B):
    """Batch tile size.

    Small batches: a single block covering the whole batch (block extent equal
    to the array dim is always legal, even if B isn't a multiple of 8).
    Large batches: at least 4 grid steps (so v7x's 2 TensorCores both get work
    under the "parallel" axis) capped at 2048 rows (~12 MiB VMEM at ~6 KiB/row,
    safe on every generation including v5e's 16 MiB scoped default)."""
    if B <= 256:
        return B
    return max(256, min(2048, _round_up(pl.cdiv(B, 4), 16)))


def dqn_forward(x, params, num_actions=2):
    """x: [B, F] float32.  params: (w1, b1, w2, b2, w3, b3); weights are
    (in_features, out_features) = nn.Linear.weight.T."""
    w1, b1, w2, b2, w3, b3 = params
    B, F = x.shape
    assert w1.shape == (F, H1) and w2.shape == (H1, H2)
    assert w3.shape == (H2, num_actions)

    # ---- Lane-dense final layer: pad output columns to a multiple of 128. ----
    NP = max(128, _round_up(num_actions, 128))
    w3_p = jnp.zeros((H2, NP), jnp.float32).at[:, :num_actions].set(w3)
    b3_p = jnp.full((1, NP), -1e30, jnp.float32).at[:, :num_actions].set(b3)

    # Weights in bf16 for the MXU; biases stay f32 (the -1e30 pad bias is the
    # mechanism that zeroes padded action columns).  x is passed as-is and cast
    # to bf16 inside the kernel.
    w1b = w1.astype(jnp.bfloat16)
    w2b = w2.astype(jnp.bfloat16)
    w3b = w3_p.astype(jnp.bfloat16)
    b1f = b1.reshape(1, H1).astype(jnp.float32)
    b2f = b2.reshape(1, H2).astype(jnp.float32)
    b3f = b3_p

    # ---- 1-D grid over batch; partial tail block instead of jnp.pad. ----
    # OOB rows of the tail tile read garbage and their writes are dropped by
    # Pallas; they never reach the returned array.
    TB = _choose_tb(B)
    grid = (pl.cdiv(B, TB),)

    # ---- Cost estimate + explicit VMEM budget. ----
    matmul_elems = F * H1 + H1 * H2 + H2 * NP
    cost = pl.CostEstimate(
        flops=2 * B * matmul_elems,
        transcendentals=B * NP,
        bytes_accessed=int(x.size * x.dtype.itemsize)  # x read
        + B * NP * 2                                   # bf16 softmax writeback
        + matmul_elems * 2 + (H1 + H2 + NP) * 4,       # weights + biases
    )
    # Double-buffered x (f32) / out (bf16) tiles + f32/bf16 intermediates
    # (~6 KiB/row) + double-buffered resident weights, with 1.5x headroom.
    per_row = 2 * F * 4 + 2 * NP * 2 + 4 * (H1 + H2 + 2 * NP) + 2 * (H1 + H2)
    w_bytes = 2 * (2 * matmul_elems + 4 * (H1 + H2 + NP))
    vmem_limit = min(48 << 20, max(8 << 20, int(1.5 * (per_row * TB + w_bytes))))

    def resident(arr):
        # Full-array block with a constant index_map -> DMA'd once, reused
        # across all grid steps (weights/biases stay VMEM-resident).
        return pl.BlockSpec(arr.shape, lambda i: (0, 0))

    out_padded = pl.pallas_call(
        dqn_kernel,
        out_shape=jax.ShapeDtypeStruct((B, NP), jnp.bfloat16),
        grid_spec=pltpu.PrefetchScalarGridSpec(
            num_scalar_prefetch=0,
            grid=grid,
            in_specs=[
                pl.BlockSpec((TB, F), lambda i: (i, 0)),  # x tile, pipelined
                resident(w1b), resident(b1f),
                resident(w2b), resident(b2f),
                resident(w3b), resident(b3f),
            ],
            out_specs=pl.BlockSpec((TB, NP), lambda i: (i, 0)),
        ),
        compiler_params=pltpu.CompilerParams(
            # Batch axis is independent -> shard across TCs on v7x (no-op on
            # v5e/v6e, where it falls back to a sequential loop).
            dimension_semantics=("parallel",),
            vmem_limit_bytes=vmem_limit,
        ),
        cost_estimate=cost,
    )(x, w1b, b1f, w2b, b2f, w3b, b3f)

    # Drop the padded action columns; return f32 probabilities like the ref.
    return out_padded[:, :num_actions].astype(jnp.float32)


def init_params(key, in_features, num_actions=2):
    # Deterministic init mimicking nn.Linear's U(-1/sqrt(fan_in), 1/sqrt(fan_in)).
    dims = [(in_features, H1), (H1, H2), (H2, num_actions)]
    params = []
    for (fan_in, fan_out) in dims:
        key, kw, kb = jax.random.split(key, 3)
        bound = 1.0 / jnp.sqrt(fan_in)
        w = jax.random.uniform(kw, (fan_in, fan_out), jnp.float32, -bound, bound)
        b = jax.random.uniform(kb, (1, fan_out), jnp.float32, -bound, bound)
        params.extend([w, b])
    return params


def _reference(x, params, num_actions=2):
    # Pure-JAX reference using the same bf16 casts as the kernel.
    w1, b1, w2, b2, w3, b3 = params
    h = x.astype(jnp.bfloat16)
    h = jnp.maximum(
        jnp.dot(h, w1.astype(jnp.bfloat16), preferred_element_type=jnp.float32) + b1,
        0.0).astype(jnp.bfloat16)
    h = jnp.maximum(
        jnp.dot(h, w2.astype(jnp.bfloat16), preferred_element_type=jnp.float32) + b2,
        0.0).astype(jnp.bfloat16)
    logits = jnp.dot(h, w3.astype(jnp.bfloat16),
                     preferred_element_type=jnp.float32) + b3
    return jax.nn.softmax(logits, axis=1)


if __name__ == "__main__":
    width, height = 16, 16
    batch = 2
    num_actions = 2
    in_features = width * height

    key = jax.random.PRNGKey(0)
    key, kx = jax.random.split(key)
    x = jax.random.normal(kx, (batch, in_features), jnp.float32)
    params = init_params(key, in_features, num_actions=num_actions)

    out = dqn_forward(x, params, num_actions=num_actions)
    out = jax.block_until_ready(out)

    # Sanity checks: shape, softmax rows sum to ~1 (approx reciprocal + bf16
    # output), and agreement with a pure-JAX bf16 reference.
    assert out.shape == (batch, num_actions)
    assert jnp.allclose(jnp.sum(out, axis=1), 1.0, atol=1e-2)
    ref = _reference(x, params, num_actions=num_actions)
    assert jnp.allclose(out, ref, atol=2e-2)
    print("KERNEL_OK")
</pallas_src>

<mosaic_0001>
module attributes {stable_mosaic.version = 11 : i64} {
  func.func @dqn_kernel(%arg0: i32, %arg1: memref<2x256xf32, #tpu.memory_space<vmem>>, %arg2: memref<256x128xbf16, #tpu.memory_space<vmem>>, %arg3: memref<1x128xf32, #tpu.memory_space<vmem>>, %arg4: memref<128x256xbf16, #tpu.memory_space<vmem>>, %arg5: memref<1x256xf32, #tpu.memory_space<vmem>>, %arg6: memref<256x128xbf16, #tpu.memory_space<vmem>>, %arg7: memref<1x128xf32, #tpu.memory_space<vmem>>, %arg8: memref<2x128xbf16, #tpu.memory_space<vmem>>) attributes {dimension_semantics = [#tpu.dimension_semantics<parallel>], iteration_bounds = array<i64: 1>, scalar_prefetch = 0 : i64, scratch_operands = 0 : i64, tpu.core_type = #tpu.core_type<tc>, window_params = [{transform_indices = @transform_0, window_bounds = array<i64: 2, 256>}, {pipeline_mode = #tpu.pipeline_mode<synchronous>, transform_indices = @transform_1, window_bounds = array<i64: 256, 128>}, {pipeline_mode = #tpu.pipeline_mode<synchronous>, transform_indices = @transform_2, window_bounds = array<i64: 1, 128>}, {pipeline_mode = #tpu.pipeline_mode<synchronous>, transform_indices = @transform_3, window_bounds = array<i64: 128, 256>}, {pipeline_mode = #tpu.pipeline_mode<synchronous>, transform_indices = @transform_4, window_bounds = array<i64: 1, 256>}, {pipeline_mode = #tpu.pipeline_mode<synchronous>, transform_indices = @transform_5, window_bounds = array<i64: 256, 128>}, {pipeline_mode = #tpu.pipeline_mode<synchronous>, transform_indices = @transform_6, window_bounds = array<i64: 1, 128>}, {transform_indices = @transform_7, window_bounds = array<i64: 2, 128>}]} {
    %c0 = arith.constant 0 : index
    %c0_0 = arith.constant 0 : index
    %0 = vector.load %arg1[%c0, %c0_0] : memref<2x256xf32, #tpu.memory_space<vmem>>, vector<2x256xf32>
    %1 = arith.truncf %0 : vector<2x256xf32> to vector<2x256xbf16>
    %c0_1 = arith.constant 0 : index
    %c0_2 = arith.constant 0 : index
    %2 = vector.load %arg2[%c0_1, %c0_2] : memref<256x128xbf16, #tpu.memory_space<vmem>>, vector<256x128xbf16>
    %cst = arith.constant dense<0.000000e+00> : vector<2x128xf32>
    %3 = tpu.matmul %1, %2, %cst {dimension_numbers = #tpu.dot_dimension_numbers<[1], [0], [0], [1], [0, 0, 1, 1], [], []>} : vector<2x256xbf16>, vector<256x128xbf16>, vector<2x128xf32> -> vector<2x128xf32>
    %c0_3 = arith.constant 0 : index
    %c0_4 = arith.constant 0 : index
    %4 = vector.load %arg3[%c0_3, %c0_4] : memref<1x128xf32, #tpu.memory_space<vmem>>, vector<1x128xf32>
    %5 = vector.broadcast %4 : vector<1x128xf32> to vector<2x128xf32>
    %6 = arith.addf %3, %5 : vector<2x128xf32>
    %cst_5 = arith.constant 0.000000e+00 : f32
    %7 = vector.broadcast %cst_5 : f32 to vector<2x128xf32>
    %8 = arith.maximumf %6, %7 : vector<2x128xf32>
    %9 = arith.truncf %8 : vector<2x128xf32> to vector<2x128xbf16>
    %c0_6 = arith.constant 0 : index
    %c0_7 = arith.constant 0 : index
    %10 = vector.load %arg4[%c0_6, %c0_7] : memref<128x256xbf16, #tpu.memory_space<vmem>>, vector<128x256xbf16>
    %cst_8 = arith.constant dense<0.000000e+00> : vector<2x256xf32>
    %11 = tpu.matmul %9, %10, %cst_8 {dimension_numbers = #tpu.dot_dimension_numbers<[1], [0], [0], [1], [0, 0, 1, 1], [], []>} : vector<2x128xbf16>, vector<128x256xbf16>, vector<2x256xf32> -> vector<2x256xf32>
    %c0_9 = arith.constant 0 : index
    %c0_10 = arith.constant 0 : index
    %12 = vector.load %arg5[%c0_9, %c0_10] : memref<1x256xf32, #tpu.memory_space<vmem>>, vector<1x256xf32>
    %13 = vector.broadcast %12 : vector<1x256xf32> to vector<2x256xf32>
    %14 = arith.addf %11, %13 : vector<2x256xf32>
    %cst_11 = arith.constant 0.000000e+00 : f32
    %15 = vector.broadcast %cst_11 : f32 to vector<2x256xf32>
    %16 = arith.maximumf %14, %15 : vector<2x256xf32>
    %17 = arith.truncf %16 : vector<2x256xf32> to vector<2x256xbf16>
    %c0_12 = arith.constant 0 : index
    %c0_13 = arith.constant 0 : index
    %18 = vector.load %arg6[%c0_12, %c0_13] : memref<256x128xbf16, #tpu.memory_space<vmem>>, vector<256x128xbf16>
    %cst_14 = arith.constant dense<0.000000e+00> : vector<2x128xf32>
    %19 = tpu.matmul %17, %18, %cst_14 {dimension_numbers = #tpu.dot_dimension_numbers<[1], [0], [0], [1], [0, 0, 1, 1], [], []>} : vector<2x256xbf16>, vector<256x128xbf16>, vector<2x128xf32> -> vector<2x128xf32>
    %c0_15 = arith.constant 0 : index
    %c0_16 = arith.constant 0 : index
    %20 = vector.load %arg7[%c0_15, %c0_16] : memref<1x128xf32, #tpu.memory_space<vmem>>, vector<1x128xf32>
    %21 = vector.broadcast %20 : vector<1x128xf32> to vector<2x128xf32>
    %22 = arith.addf %19, %21 : vector<2x128xf32>
    %cst_17 = arith.constant dense<0xFF800000> : vector<2xf32>
    %23 = vector.multi_reduction <maximumf>, %22, %cst_17 [1] : vector<2x128xf32> to vector<2xf32>
    %24 = vector.shape_cast %23 : vector<2xf32> to vector<2x1xf32>
    %25 = vector.broadcast %24 : vector<2x1xf32> to vector<2x128xf32>
    %26 = arith.subf %22, %25 : vector<2x128xf32>
    %27 = math.exp %26 : vector<2x128xf32>
    %cst_18 = arith.constant dense<0.000000e+00> : vector<2xf32>
    %28 = vector.multi_reduction <add>, %27, %cst_18 [1] : vector<2x128xf32> to vector<2xf32>
    %29 = vector.shape_cast %28 : vector<2xf32> to vector<2x1xf32>
    %30 = tpu.reciprocal %29 {approx = true} : vector<2x1xf32> -> vector<2x1xf32>
    %31 = vector.broadcast %30 : vector<2x1xf32> to vector<2x128xf32>
    %32 = arith.mulf %27, %31 : vector<2x128xf32>
    %33 = arith.truncf %32 : vector<2x128xf32> to vector<2x128xbf16>
    %c0_19 = arith.constant 0 : index
    %c0_20 = arith.constant 0 : index
    %34 = vector.load %arg8[%c0_19, %c0_20] : memref<2x128xbf16, #tpu.memory_space<vmem>>, vector<2x128xbf16>
    tpu.vector_store %arg8[%c0_19, %c0_20], %33 {strides = array<i32>} : memref<2x128xbf16, #tpu.memory_space<vmem>>, vector<2x128xbf16>,
    return
  }
  func.func @transform_0(%arg0: i32) -> (i32, i32) {
    %c0_i32 = arith.constant 0 : i32
    %c0_i32_0 = arith.constant 0 : i32
    return %arg0, %c0_i32 : i32, i32
  }
  func.func @transform_1(%arg0: i32) -> (i32, i32) {
    %c0_i32 = arith.constant 0 : i32
    %c0_i32_0 = arith.constant 0 : i32
    %c0_i32_1 = arith.constant 0 : i32
    return %c0_i32, %c0_i32_0 : i32, i32
  }
  func.func @transform_2(%arg0: i32) -> (i32, i32) {
    %c0_i32 = arith.constant 0 : i32
    %c0_i32_0 = arith.constant 0 : i32
    %c0_i32_1 = arith.constant 0 : i32
    return %c0_i32, %c0_i32_0 : i32, i32
  }
  func.func @transform_3(%arg0: i32) -> (i32, i32) {
    %c0_i32 = arith.constant 0 : i32
    %c0_i32_0 = arith.constant 0 : i32
    %c0_i32_1 = arith.constant 0 : i32
    return %c0_i32, %c0_i32_0 : i32, i32
  }
  func.func @transform_4(%arg0: i32) -> (i32, i32) {
    %c0_i32 = arith.constant 0 : i32
    %c0_i32_0 = arith.constant 0 : i32
    %c0_i32_1 = arith.constant 0 : i32
    return %c0_i32, %c0_i32_0 : i32, i32
  }
  func.func @transform_5(%arg0: i32) -> (i32, i32) {
    %c0_i32 = arith.constant 0 : i32
    %c0_i32_0 = arith.constant 0 : i32
    %c0_i32_1 = arith.constant 0 : i32
    return %c0_i32, %c0_i32_0 : i32, i32
  }
  func.func @transform_6(%arg0: i32) -> (i32, i32) {
    %c0_i32 = arith.constant 0 : i32
    %c0_i32_0 = arith.constant 0 : i32
    %c0_i32_1 = arith.constant 0 : i32
    return %c0_i32, %c0_i32_0 : i32, i32
  }
  func.func @transform_7(%arg0: i32) -> (i32, i32) {
    %c0_i32 = arith.constant 0 : i32
    %c0_i32_0 = arith.constant 0 : i32
    return %arg0, %c0_i32 : i32, i32
  }
}

</mosaic_0001>

<llo_original>
// kernel: tpu_custom_call.1
$region0: #{tpu_custom_call.1}
  #allocation0 [shape = 'u32[]', space=smem, size = 0x4, offset = 0x4, fixed_abs, tag = 'smem constant byte address 0x4 - core index']
  #allocation1 [shape = 'u32[144,128]{1,0:T(1,128)}', space=vmem, size = 0x12000, scoped, tag = 'internal scratch']
  %s0 = inlined_call_operand.hbm [shape: f32[2,256], index: 0, kind: input, shape index: {}]
  %s1 = inlined_call_operand.hbm [shape: bf16[256,128], index: 1, kind: input, shape index: {}]
  %s2 = inlined_call_operand.vmem [shape: f32[1,128], index: 2, kind: input, shape index: {}]
  %s3 = inlined_call_operand.hbm [shape: bf16[128,256], index: 3, kind: input, shape index: {}]
  %s4 = inlined_call_operand.vmem [shape: f32[1,256], index: 4, kind: input, shape index: {}]
  %s5 = inlined_call_operand.hbm [shape: bf16[256,128], index: 5, kind: input, shape index: {}]
  %s6 = inlined_call_operand.vmem [shape: f32[1,128], index: 6, kind: input, shape index: {}]
  %s7 = inlined_call_operand.hbm [shape: bf16[2,128], index: 7, kind: output, shape index: {}]
  %s8 = sld [smem:[#allocation0]]
  $region54: #{tpu_custom_call.1} parent=0
    _
  %s10 = ssub.s32 1, %s8
  %s11 = scalar_select 0, %s10, %s8
  $region1: #{tpu_custom_call.1} parent=0
    #allocation2 [shape = 'u8[2048]{0}', space=vmem, size = 0x800, scoped, tag = 'input window, operand 0, single buffered']
    #allocation3 [shape = 's32[1]{0}', space=sflag, size = 0x4, scoped, tag = 'scoped memory for tpu_custom_call.1']
    #allocation4 [shape = 's32[1]{0}', space=sflag, size = 0x4, scoped, tag = 'scoped memory for tpu_custom_call.1']
    #allocation5 [shape = 'u8[65536]{0}', space=vmem, size = 0x10000, scoped, tag = 'input window, operand 1, single buffered']
    #allocation6 [shape = 's32[1]{0}', space=sflag, size = 0x4, scoped, tag = 'scoped memory for tpu_custom_call.1']
    #allocation7 [shape = 'u8[65536]{0}', space=vmem, size = 0x10000, scoped, tag = 'input window, operand 3, single buffered']
    #allocation8 [shape = 'u8[65536]{0}', space=vmem, size = 0x10000, scoped, tag = 'input window, operand 5, single buffered']
    #allocation9 [shape = 's32[1]{0}', space=sflag, size = 0x4, scoped, tag = 'scoped memory for tpu_custom_call.1']
    #allocation10 [shape = 'u8[512]{0}', space=vmem, size = 0x400, scoped, tag = 'output window, operand 0, single buffered']
    %12 = vsyncpa [#allocation3], 0
    %13 = vsyncpa [#allocation6], 0
    %14 = vsyncpa [#allocation9], 0
    %15 = vsyncpa [#allocation4], 0
    // Predicated region
    $region2: #{tpu_custom_call.1} parent=1 // pred_check
      _
    $region3: #{tpu_custom_call.1} parent=1 // pred_check_branch
      %17 = sbr.rel (0) target = $region5
    $region4: #{tpu_custom_call.1} parent=1 // pred_region
      %s19 = ssub.s32 64, 64
      %20 = vsyncadd [#allocation3], %s19
      %s22 = sshll.u32 [#allocation2], 4
      %s23 = int_to_ptr.vmem [resolvable:$true] %s22
      %25 = dma.hbm_to_vmem [thread:$0]  %s0, 64, %s23, [#allocation3]
    $region5: #{tpu_custom_call.1} parent=1 // pred_fallthru
      _
    // Predicated region
    $region6: #{tpu_custom_call.1} parent=1 // pred_check
      _
    $region7: #{tpu_custom_call.1} parent=1 // pred_check_branch
      %27 = sbr.rel (0) target = $region9
    $region8: #{tpu_custom_call.1} parent=1 // pred_region
      %s29 = ssub.s32 2048, 2048
      %30 = vsyncadd [#allocation6], %s29
      %s31 = sshll.u32 [#allocation5], 4
      %s32 = int_to_ptr.vmem [resolvable:$true] %s31
      %37 = dma.hbm_to_vmem [thread:$0]  %s1, 2048, %s32, [#allocation6], 64, 64, 4
    $region9: #{tpu_custom_call.1} parent=1 // pred_fallthru
      _
    // Predicated region
    $region10: #{tpu_custom_call.1} parent=1 // pred_check
      _
    $region11: #{tpu_custom_call.1} parent=1 // pred_check_branch
      %39 = sbr.rel (0) target = $region13
    $region12: #{tpu_custom_call.1} parent=1 // pred_region
      _
    $region13: #{tpu_custom_call.1} parent=1 // pred_fallthru
      _
    // Predicated region
    $region14: #{tpu_custom_call.1} parent=1 // pred_check
      _
    $region15: #{tpu_custom_call.1} parent=1 // pred_check_branch
      %41 = sbr.rel (0) target = $region17
    $region16: #{tpu_custom_call.1} parent=1 // pred_region
      %s43 = ssub.s32 2048, 2048
      %44 = vsyncadd [#allocation6], %s43
      %s45 = sshll.u32 [#allocation7], 4
      %s46 = int_to_ptr.vmem [resolvable:$true] %s45
      %51 = dma.hbm_to_vmem [thread:$0]  %s3, 2048, %s46, [#allocation6], 128, 128, 8
    $region17: #{tpu_custom_call.1} parent=1 // pred_fallthru
      _
    // Predicated region
    $region18: #{tpu_custom_call.1} parent=1 // pred_check
      _
    $region19: #{tpu_custom_call.1} parent=1 // pred_check_branch
      %53 = sbr.rel (0) target = $region21
    $region20: #{tpu_custom_call.1} parent=1 // pred_region
      _
    $region21: #{tpu_custom_call.1} parent=1 // pred_fallthru
      _
    // Predicated region
    $region22: #{tpu_custom_call.1} parent=1 // pred_check
      _
    $region23: #{tpu_custom_call.1} parent=1 // pred_check_branch
      %55 = sbr.rel (0) target = $region25
    $region24: #{tpu_custom_call.1} parent=1 // pred_region
      %s57 = ssub.s32 2048, 2048
      %58 = vsyncadd [#allocation9], %s57
      %s59 = sshll.u32 [#allocation8], 4
      %s60 = int_to_ptr.vmem [resolvable:$true] %s59
      %65 = dma.hbm_to_vmem [thread:$0]  %s5, 2048, %s60, [#allocation9], 64, 64, 4
    $region25: #{tpu_custom_call.1} parent=1 // pred_fallthru
      _
    // Predicated region
    $region26: #{tpu_custom_call.1} parent=1 // pred_check
      _
    $region27: #{tpu_custom_call.1} parent=1 // pred_check_branch
      %67 = sbr.rel (0) target = $region29
    $region28: #{tpu_custom_call.1} parent=1 // pred_region
      _
    $region29: #{tpu_custom_call.1} parent=1 // pred_fallthru
      _
    // Predicated region
    $region30: #{tpu_custom_call.1} parent=1 // pred_check
      _
    $region31: #{tpu_custom_call.1} parent=1 // pred_check_branch
      %69 = sbr.rel (0) target = $region33
    $region32: #{tpu_custom_call.1} parent=1 // pred_region
      %70 = dma.done [#allocation3], 64
    $region33: #{tpu_custom_call.1} parent=1 // pred_fallthru
      _
    // Predicated region
    $region34: #{tpu_custom_call.1} parent=1 // pred_check
      _
    $region35: #{tpu_custom_call.1} parent=1 // pred_check_branch
      %72 = sbr.rel (0) target = $region37
    $region36: #{tpu_custom_call.1} parent=1 // pred_region
      %73 = dma.done [#allocation6], 2048
    $region37: #{tpu_custom_call.1} parent=1 // pred_fallthru
      _
    // Predicated region
    $region38: #{tpu_custom_call.1} parent=1 // pred_check
      _
    $region39: #{tpu_custom_call.1} parent=1 // pred_check_branch
      %75 = sbr.rel (0) target = $region41
    $region40: #{tpu_custom_call.1} parent=1 // pred_region
      %76 = dma.done [#allocation6], 2048
    $region41: #{tpu_custom_call.1} parent=1 // pred_fallthru
      _
    // Predicated region
    $region42: #{tpu_custom_call.1} parent=1 // pred_check
      _
    $region43: #{tpu_custom_call.1} parent=1 // pred_check_branch
      %78 = sbr.rel (0) target = $region45
    $region44: #{tpu_custom_call.1} parent=1 // pred_region
      %79 = dma.done [#allocation9], 2048
    $region45: #{tpu_custom_call.1} parent=1 // pred_fallthru
      _
    %v81 = vld [vmem:[#allocation2] sm:$0xf]
    %v84 = vunpack.c.l.s4 1983009808
    %v85 = vunpack.c.0.s8 %v84
    %v86 = vlaneseq
    %v87 = vshrl.u32 %v86, 7
    %v88 = vsub.s32 %v85, %v87
    %v89 = vrot.slane %v81, %v88
    %v90 = vcombine.high %v89, %v89
    %v93 = vpack.c.bf16 %v89, %v89
    %v94 = vpack.c.bf16 %v90, %v90
    %v95 = vld [vmem:[#allocation5] sm:$0xf]
    %v96 = vld [vmem:[#allocation5 + $0x4] sm:$0xf]
    %v97 = vld [vmem:[#allocation5 + $0x8] sm:$0xf]
    %v98 = vld [vmem:[#allocation5 + $0xc] sm:$0xf]
    %v99 = vld [vmem:[#allocation5 + $0x10] sm:$0xf]
    %v100 = vld [vmem:[#allocation5 + $0x14] sm:$0xf]
    %v101 = vld [vmem:[#allocation5 + $0x18] sm:$0xf]
    %v102 = vld [vmem:[#allocation5 + $0x1c] sm:$0xf]
    %v103 = vld [vmem:[#allocation5 + $0x20] sm:$0xf]
    %v104 = vld [vmem:[#allocation5 + $0x24] sm:$0xf]
    %v105 = vld [vmem:[#allocation5 + $0x28] sm:$0xf]
    %v106 = vld [vmem:[#allocation5 + $0x2c] sm:$0xf]
    %v107 = vld [vmem:[#allocation5 + $0x30] sm:$0xf]
    %v108 = vld [vmem:[#allocation5 + $0x34] sm:$0xf]
    %v109 = vld [vmem:[#allocation5 + $0x38] sm:$0xf]
    %v110 = vld [vmem:[#allocation5 + $0x3c] sm:$0xf]
    %v111 = vld [vmem:[#allocation5 + $0x40] sm:$0xf]
    %v112 = vld [vmem:[#allocation5 + $0x44] sm:$0xf]
    %v113 = vld [vmem:[#allocation5 + $0x48] sm:$0xf]
    %v114 = vld [vmem:[#allocation5 + $0x4c] sm:$0xf]
    %v115 = vld [vmem:[#allocation5 + $0x50] sm:$0xf]
    %v116 = vld [vmem:[#allocation5 + $0x54] sm:$0xf]
    %v117 = vld [vmem:[#allocation5 + $0x58] sm:$0xf]
    %v118 = vld [vmem:[#allocation5 + $0x5c] sm:$0xf]
    %v119 = vld [vmem:[#allocation5 + $0x60] sm:$0xf]
    %v120 = vld [vmem:[#allocation5 + $0x64] sm:$0xf]
    %v121 = vld [vmem:[#allocation5 + $0x68] sm:$0xf]
    %v122 = vld [vmem:[#allocation5 + $0x6c] sm:$0xf]
    %v123 = vld [vmem:[#allocation5 + $0x70] sm:$0xf]
    %v124 = vld [vmem:[#allocation5 + $0x74] sm:$0xf]
    %v125 = vld [vmem:[#allocation5 + $0x78] sm:$0xf]
    %v126 = vld [vmem:[#allocation5 + $0x7c] sm:$0xf]
    %v127 = vld [vmem:[%s2] sm:$0x1]
    %v129 = vlaneseq
    %v130 = vshrl.u32 %v129, 7
    %v131 = vsub.s32 0, %v130
    %v132 = vrot.slane %v127, %v131
    %v166 = vunpack.c.l.b16 %v95
    %v167 = vunpack.c.l.b16 %v96
    %v168 = vunpack.c.l.b16 %v97
    %v169 = vunpack.c.l.b16 %v98
    %v170 = vunpack.c.l.b16 %v99
    %v171 = vunpack.c.l.b16 %v100
    %v172 = vunpack.c.l.b16 %v101
    %v173 = vunpack.c.l.b16 %v102
    %v174 = vunpack.c.l.b16 %v103
    %v175 = vunpack.c.l.b16 %v104
    %v176 = vunpack.c.l.b16 %v105
    %v177 = vunpack.c.l.b16 %v106
    %v178 = vunpack.c.l.b16 %v107
    %v179 = vunpack.c.l.b16 %v108
    %v180 = vunpack.c.l.b16 %v109
    %v181 = vunpack.c.l.b16 %v110
    %v182 = vunpack.c.l.b16 %v111
    %v183 = vunpack.c.l.b16 %v112
    %v184 = vunpack.c.l.b16 %v113
    %v185 = vunpack.c.l.b16 %v114
    %v186 = vunpack.c.l.b16 %v115
    %v187 = vunpack.c.l.b16 %v116
    %v188 = vunpack.c.l.b16 %v117
    %v189 = vunpack.c.l.b16 %v118
    %v190 = vunpack.c.l.b16 %v119
    %v191 = vunpack.c.l.b16 %v120
    %v192 = vunpack.c.l.b16 %v121
    %v193 = vunpack.c.l.b16 %v122
    %v194 = vunpack.c.l.b16 %v123
    %v195 = vunpack.c.l.b16 %v124
    %v196 = vunpack.c.l.b16 %v125
    %v197 = vunpack.c.l.b16 %v126
    %v198 = vpack.c.b16 %v167, %v166
    %v199 = vpack.c.b16 %v169, %v168
    %v200 = vpack.c.b16 %v171, %v170
    %v201 = vpack.c.b16 %v173, %v172
    %v202 = vpack.c.b16 %v175, %v174
    %v203 = vpack.c.b16 %v177, %v176
    %v204 = vpack.c.b16 %v179, %v178
    %v205 = vpack.c.b16 %v181, %v180
    %v206 = vpack.c.b16 %v183, %v182
    %v207 = vpack.c.b16 %v185, %v184
    %v208 = vpack.c.b16 %v187, %v186
    %v209 = vpack.c.b16 %v189, %v188
    %v210 = vpack.c.b16 %v191, %v190
    %v211 = vpack.c.b16 %v193, %v192
    %v212 = vpack.c.b16 %v195, %v194
    %v213 = vpack.c.b16 %v197, %v196
    %230 = vmatprep.subr.bf16.mxu0 0
    %231 = vmatpush1.bf16.msra.mxu0 %v205
    %232 = vmatprep.subr.bf16.mxu0 0
    %233 = vmatpush1.bf16.msra.mxu0 %v204
    %234 = vmatprep.subr.bf16.mxu0 0
    %235 = vmatpush1.bf16.msra.mxu0 %v203
    %236 = vmatprep.subr.bf16.mxu0 0
    %237 = vmatpush1.bf16.msra.mxu0 %v202
    %238 = vmatprep.subr.bf16.mxu0 0
    %239 = vmatpush1.bf16.msra.mxu0 %v201
    %240 = vmatprep.subr.bf16.mxu0 0
    %241 = vmatpush1.bf16.msra.mxu0 %v200
    %242 = vmatprep.subr.bf16.mxu0 0
    %243 = vmatpush1.bf16.msra.mxu0 %v199
    %244 = vmatprep.subr.bf16.mxu0 0
    %245 = vmatpush1.bf16.msra.mxu0 %v198
    %246 = vmatprep.subr.bf16.mxu0 0
    %247 = vmatpush2.bf16.msra.mxu0 %v213
    %248 = vmatprep.subr.bf16.mxu0 0
    %249 = vmatpush2.bf16.msra.mxu0 %v212
    %250 = vmatprep.subr.bf16.mxu0 0
    %251 = vmatpush2.bf16.msra.mxu0 %v211
    %252 = vmatprep.subr.bf16.mxu0 0
    %253 = vmatpush2.bf16.msra.mxu0 %v210
    %254 = vmatprep.subr.bf16.mxu0 0
    %255 = vmatpush2.bf16.msra.mxu0 %v209
    %256 = vmatprep.subr.bf16.mxu0 0
    %257 = vmatpush2.bf16.msra.mxu0 %v208
    %258 = vmatprep.subr.bf16.mxu0 0
    %259 = vmatpush2.bf16.msra.mxu0 %v207
    %260 = vmatprep.subr.bf16.mxu0 0
    %261 = vmatpush2.bf16.msra.mxu0 %v206
    %262 = vmatprep.mubr.bf16.mxu0 %v94
    %263 = vmatmul.mubr.bf16.gmra.mxu0 %v93
    %v264 = vpop.f32.mrf.mxu0
    %v265 = vadd.f32 %v132, %v264
    %v266 = vpop.f32.mrf.mxu0
    %v267 = vpop.f32.mrf.mxu0
    %v268 = vpop.f32.mrf.mxu0
    %269 = vdwg.mxu0
    %v270 = vmax.f32 %v265, 0.0
    %v271 = vpack.c.bf16 %v270, %v270
    %v272 = vld [vmem:[#allocation7] sm:$0xff]
    %v273 = vld [vmem:[#allocation7 + $0x8] sm:$0xff]
    %v274 = vld [vmem:[#allocation7 + $0x10] sm:$0xff]
    %v275 = vld [vmem:[#allocation7 + $0x18] sm:$0xff]
    %v276 = vld [vmem:[#allocation7 + $0x20] sm:$0xff]
    %v277 = vld [vmem:[#allocation7 + $0x28] sm:$0xff]
    %v278 = vld [vmem:[#allocation7 + $0x30] sm:$0xff]
    %v279 = vld [vmem:[#allocation7 + $0x38] sm:$0xff]
    %v280 = vld [vmem:[#allocation7 + $0x40] sm:$0xff]
    %v281 = vld [vmem:[#allocation7 + $0x48] sm:$0xff]
    %v282 = vld [vmem:[#allocation7 + $0x50] sm:$0xff]
    %v283 = vld [vmem:[#allocation7 + $0x58] sm:$0xff]
    %v284 = vld [vmem:[#allocation7 + $0x60] sm:$0xff]
    %v285 = vld [vmem:[#allocation7 + $0x68] sm:$0xff]
    %v286 = vld [vmem:[#allocation7 + $0x70] sm:$0xff]
    %v287 = vld [vmem:[#allocation7 + $0x78] sm:$0xff]
    %v288 = vld [vmem:[%s4] sm:$0x3]
    %v290 = vlaneseq
    %v291 = vshrl.u32 %v290, 7
    %v292 = vsub.s32 0, %v291
    %v293 = vrot.slane %v288, %v292
    %v294 = vlaneseq
    %v295 = vshrl.u32 %v294, 7
    %v296 = vsub.s32 1, %v295
    %v297 = vrot.slane %v288, %v296
    %v316 = vunpack.c.l.b16 %v272
    %v317 = vunpack.c.h.b16 %v272
    %v318 = vunpack.c.l.b16 %v273
    %v319 = vunpack.c.h.b16 %v273
    %v320 = vunpack.c.l.b16 %v274
    %v321 = vunpack.c.h.b16 %v274
    %v322 = vunpack.c.l.b16 %v275
    %v323 = vunpack.c.h.b16 %v275
    %v324 = vunpack.c.l.b16 %v276
    %v325 = vunpack.c.h.b16 %v276
    %v326 = vunpack.c.l.b16 %v277
    %v327 = vunpack.c.h.b16 %v277
    %v328 = vunpack.c.l.b16 %v278
    %v329 = vunpack.c.h.b16 %v278
    %v330 = vunpack.c.l.b16 %v279
    %v331 = vunpack.c.h.b16 %v279
    %v332 = vunpack.c.l.b16 %v280
    %v333 = vunpack.c.h.b16 %v280
    %v334 = vunpack.c.l.b16 %v281
    %v335 = vunpack.c.h.b16 %v281
    %v336 = vunpack.c.l.b16 %v282
    %v337 = vunpack.c.h.b16 %v282
    %v338 = vunpack.c.l.b16 %v283
    %v339 = vunpack.c.h.b16 %v283
    %v340 = vunpack.c.l.b16 %v284
    %v341 = vunpack.c.h.b16 %v284
    %v342 = vunpack.c.l.b16 %v285
    %v343 = vunpack.c.h.b16 %v285
    %v344 = vunpack.c.l.b16 %v286
    %v345 = vunpack.c.h.b16 %v286
    %v346 = vunpack.c.l.b16 %v287
    %v347 = vunpack.c.h.b16 %v287
    %v348 = vpack.c.b16 %v318, %v316
    %v349 = vpack.c.b16 %v319, %v317
    %v350 = vpack.c.b16 %v322, %v320
    %v351 = vpack.c.b16 %v323, %v321
    %v352 = vpack.c.b16 %v326, %v324
    %v353 = vpack.c.b16 %v327, %v325
    %v354 = vpack.c.b16 %v330, %v328
    %v355 = vpack.c.b16 %v331, %v329
    %v356 = vpack.c.b16 %v334, %v332
    %v357 = vpack.c.b16 %v335, %v333
    %v358 = vpack.c.b16 %v338, %v336
    %v359 = vpack.c.b16 %v339, %v337
    %v360 = vpack.c.b16 %v342, %v340
    %v361 = vpack.c.b16 %v343, %v341
    %v362 = vpack.c.b16 %v346, %v344
    %v363 = vpack.c.b16 %v347, %v345
    %380 = vmatprep.subr.bf16.mxu0 %v363
    %381 = vmatpush1.bf16.msra.mxu0 %v362
    %382 = vmatprep.subr.bf16.mxu0 %v361
    %383 = vmatpush1.bf16.msra.mxu0 %v360
    %384 = vmatprep.subr.bf16.mxu0 %v359
    %385 = vmatpush1.bf16.msra.mxu0 %v358
    %386 = vmatprep.subr.bf16.mxu0 %v357
    %387 = vmatpush1.bf16.msra.mxu0 %v356
    %388 = vmatprep.subr.bf16.mxu0 %v355
    %389 = vmatpush1.bf16.msra.mxu0 %v354
    %390 = vmatprep.subr.bf16.mxu0 %v353
    %391 = vmatpush1.bf16.msra.mxu0 %v352
    %392 = vmatprep.subr.bf16.mxu0 %v351
    %393 = vmatpush1.bf16.msra.mxu0 %v350
    %394 = vmatprep.subr.bf16.mxu0 %v349
    %395 = vmatpush1.bf16.msra.mxu0 %v348
    %396 = vmatprep.subr.bf16.mxu0 0
    %397 = vmatpush2.bf16.msra.mxu0 0
    %398 = vmatprep.subr.bf16.mxu0 0
    %399 = vmatpush2.bf16.msra.mxu0 0
    %400 = vmatprep.subr.bf16.mxu0 0
    %401 = vmatpush2.bf16.msra.mxu0 0
    %402 = vmatprep.subr.bf16.mxu0 0
    %403 = vmatpush2.bf16.msra.mxu0 0
    %404 = vmatprep.subr.bf16.mxu0 0
    %405 = vmatpush2.bf16.msra.mxu0 0
    %406 = vmatprep.subr.bf16.mxu0 0
    %407 = vmatpush2.bf16.msra.mxu0 0
    %408 = vmatprep.subr.bf16.mxu0 0
    %409 = vmatpush2.bf16.msra.mxu0 0
    %410 = vmatprep.subr.bf16.mxu0 0
    %411 = vmatpush2.bf16.msra.mxu0 0
    %412 = vmatprep.mubr.bf16.mxu0 0
    %413 = vmatmul.mubr.bf16.gmra.mxu0 %v271
    %v414 = vpop.f32.mrf.mxu0
    %v415 = vadd.f32 %v293, %v414
    %v416 = vpop.f32.mrf.mxu0
    %v417 = vadd.f32 %v297, %v416
    %v418 = vpop.f32.mrf.mxu0
    %v419 = vpop.f32.mrf.mxu0
    %420 = vdwg.mxu0
    %v421 = vmax.f32 %v415, 0.0
    %v422 = vmax.f32 %v417, 0.0
    %v423 = vpack.c.bf16 %v421, %v421
    %v424 = vpack.c.bf16 %v422, %v422
    %v425 = vld [vmem:[#allocation8] sm:$0xf]
    %v426 = vld [vmem:[#allocation8 + $0x4] sm:$0xf]
    %v427 = vld [vmem:[#allocation8 + $0x8] sm:$0xf]
    %v428 = vld [vmem:[#allocation8 + $0xc] sm:$0xf]
    %v429 = vld [vmem:[#allocation8 + $0x10] sm:$0xf]
    %v430 = vld [vmem:[#allocation8 + $0x14] sm:$0xf]
    %v431 = vld [vmem:[#allocation8 + $0x18] sm:$0xf]
    %v432 = vld [vmem:[#allocation8 + $0x1c] sm:$0xf]
    %v433 = vld [vmem:[#allocation8 + $0x20] sm:$0xf]
    %v434 = vld [vmem:[#allocation8 + $0x24] sm:$0xf]
    %v435 = vld [vmem:[#allocation8 + $0x28] sm:$0xf]
    %v436 = vld [vmem:[#allocation8 + $0x2c] sm:$0xf]
    %v437 = vld [vmem:[#allocation8 + $0x30] sm:$0xf]
    %v438 = vld [vmem:[#allocation8 + $0x34] sm:$0xf]
    %v439 = vld [vmem:[#allocation8 + $0x38] sm:$0xf]
    %v440 = vld [vmem:[#allocation8 + $0x3c] sm:$0xf]
    %v441 = vld [vmem:[#allocation8 + $0x40] sm:$0xf]
    %v442 = vld [vmem:[#allocation8 + $0x44] sm:$0xf]
    %v443 = vld [vmem:[#allocation8 + $0x48] sm:$0xf]
    %v444 = vld [vmem:[#allocation8 + $0x4c] sm:$0xf]
    %v445 = vld [vmem:[#allocation8 + $0x50] sm:$0xf]
    %v446 = vld [vmem:[#allocation8 + $0x54] sm:$0xf]
    %v447 = vld [vmem:[#allocation8 + $0x58] sm:$0xf]
    %v448 = vld [vmem:[#allocation8 + $0x5c] sm:$0xf]
    %v449 = vld [vmem:[#allocation8 + $0x60] sm:$0xf]
    %v450 = vld [vmem:[#allocation8 + $0x64] sm:$0xf]
    %v451 = vld [vmem:[#allocation8 + $0x68] sm:$0xf]
    %v452 = vld [vmem:[#allocation8 + $0x6c] sm:$0xf]
    %v453 = vld [vmem:[#allocation8 + $0x70] sm:$0xf]
    %v454 = vld [vmem:[#allocation8 + $0x74] sm:$0xf]
    %v455 = vld [vmem:[#allocation8 + $0x78] sm:$0xf]
    %v456 = vld [vmem:[#allocation8 + $0x7c] sm:$0xf]
    %v457 = vld [vmem:[%s6] sm:$0x1]
    %v459 = vlaneseq
    %v460 = vshrl.u32 %v459, 7
    %v461 = vsub.s32 0, %v460
    %v462 = vrot.slane %v457, %v461
    %v496 = vunpack.c.l.b16 %v425
    %v497 = vunpack.c.l.b16 %v426
    %v498 = vunpack.c.l.b16 %v427
    %v499 = vunpack.c.l.b16 %v428
    %v500 = vunpack.c.l.b16 %v429
    %v501 = vunpack.c.l.b16 %v430
    %v502 = vunpack.c.l.b16 %v431
    %v503 = vunpack.c.l.b16 %v432
    %v504 = vunpack.c.l.b16 %v433
    %v505 = vunpack.c.l.b16 %v434
    %v506 = vunpack.c.l.b16 %v435
    %v507 = vunpack.c.l.b16 %v436
    %v508 = vunpack.c.l.b16 %v437
    %v509 = vunpack.c.l.b16 %v438
    %v510 = vunpack.c.l.b16 %v439
    %v511 = vunpack.c.l.b16 %v440
    %v512 = vunpack.c.l.b16 %v441
    %v513 = vunpack.c.l.b16 %v442
    %v514 = vunpack.c.l.b16 %v443
    %v515 = vunpack.c.l.b16 %v444
    %v516 = vunpack.c.l.b16 %v445
    %v517 = vunpack.c.l.b16 %v446
    %v518 = vunpack.c.l.b16 %v447
    %v519 = vunpack.c.l.b16 %v448
    %v520 = vunpack.c.l.b16 %v449
    %v521 = vunpack.c.l.b16 %v450
    %v522 = vunpack.c.l.b16 %v451
    %v523 = vunpack.c.l.b16 %v452
    %v524 = vunpack.c.l.b16 %v453
    %v525 = vunpack.c.l.b16 %v454
    %v526 = vunpack.c.l.b16 %v455
    %v527 = vunpack.c.l.b16 %v456
    %v528 = vpack.c.b16 %v497, %v496
    %v529 = vpack.c.b16 %v499, %v498
    %v530 = vpack.c.b16 %v501, %v500
    %v531 = vpack.c.b16 %v503, %v502
    %v532 = vpack.c.b16 %v505, %v504
    %v533 = vpack.c.b16 %v507, %v506
    %v534 = vpack.c.b16 %v509, %v508
    %v535 = vpack.c.b16 %v511, %v510
    %v536 = vpack.c.b16 %v513, %v512
    %v537 = vpack.c.b16 %v515, %v514
    %v538 = vpack.c.b16 %v517, %v516
    %v539 = vpack.c.b16 %v519, %v518
    %v540 = vpack.c.b16 %v521, %v520
    %v541 = vpack.c.b16 %v523, %v522
    %v542 = vpack.c.b16 %v525, %v524
    %v543 = vpack.c.b16 %v527, %v526
    %560 = vmatprep.subr.bf16.mxu0 0
    %561 = vmatpush1.bf16.msra.mxu0 %v535
    %562 = vmatprep.subr.bf16.mxu0 0
    %563 = vmatpush1.bf16.msra.mxu0 %v534
    %564 = vmatprep.subr.bf16.mxu0 0
    %565 = vmatpush1.bf16.msra.mxu0 %v533
    %566 = vmatprep.subr.bf16.mxu0 0
    %567 = vmatpush1.bf16.msra.mxu0 %v532
    %568 = vmatprep.subr.bf16.mxu0 0
    %569 = vmatpush1.bf16.msra.mxu0 %v531
    %570 = vmatprep.subr.bf16.mxu0 0
    %571 = vmatpush1.bf16.msra.mxu0 %v530
    %572 = vmatprep.subr.bf16.mxu0 0
    %573 = vmatpush1.bf16.msra.mxu0 %v529
    %574 = vmatprep.subr.bf16.mxu0 0
    %575 = vmatpush1.bf16.msra.mxu0 %v528
    %576 = vmatprep.subr.bf16.mxu0 0
    %577 = vmatpush2.bf16.msra.mxu0 %v543
    %578 = vmatprep.subr.bf16.mxu0 0
    %579 = vmatpush2.bf16.msra.mxu0 %v542
    %580 = vmatprep.subr.bf16.mxu0 0
    %581 = vmatpush2.bf16.msra.mxu0 %v541
    %582 = vmatprep.subr.bf16.mxu0 0
    %583 = vmatpush2.bf16.msra.mxu0 %v540
    %584 = vmatprep.subr.bf16.mxu0 0
    %585 = vmatpush2.bf16.msra.mxu0 %v539
    %586 = vmatprep.subr.bf16.mxu0 0
    %587 = vmatpush2.bf16.msra.mxu0 %v538
    %588 = vmatprep.subr.bf16.mxu0 0
    %589 = vmatpush2.bf16.msra.mxu0 %v537
    %590 = vmatprep.subr.bf16.mxu0 0
    %591 = vmatpush2.bf16.msra.mxu0 %v536
    %592 = vmatprep.mubr.bf16.mxu0 %v424
    %593 = vmatmul.mubr.bf16.gmra.mxu0 %v423
    %v594 = vpop.f32.mrf.mxu0
    %v595 = vadd.f32 %v462, %v594
    %v596 = vpop.f32.mrf.mxu0
    %v597 = vpop.f32.mrf.mxu0
    %v598 = vpop.f32.mrf.mxu0
    %599 = vdwg.mxu0
    %vm600 = vcmask 1041408
    %v601 = vsel %vm600, %v595, -inf
    %602 = vmax.xlane.f32.xlu0 %v601
    %v603 = vpop.xlane.xlu0 %602
    %v604 = vsub.f32 %v595, %v603
    %v605 = vmul.f32 %v604, 1.442695
    %v606 = vpow.pop %v605
    %v607 = vsel %vm600, %v606, 0.0
    %608 = vadd.xlane.f32.xlu0 %v607
    %v609 = vpop.xlane.xlu0 %608
    %v610 = vrcp.pop %v609
    %v611 = vmul.f32 %v606, %v610
    %v612 = vpack.c.bf16 %v611, %v611
    %613 = vst [vmem:[#allocation10] sm:$0x1] %v612
    // Predicated region
    $region46: #{tpu_custom_call.1} parent=1 // pred_check
      _
    $region47: #{tpu_custom_call.1} parent=1 // pred_check_branch
      %615 = sbr.rel (0) target = $region49
    $region48: #{tpu_custom_call.1} parent=1 // pred_region
      %s617 = ssub.s32 16, 16
      %618 = vsyncadd [#allocation4], %s617
      %s620 = sshll.u32 [#allocation10], 4
      %s621 = int_to_ptr.vmem [resolvable:$true] %s620
      %623 = dma.vmem_to_hbm [thread:$0]  %s621, 16, %s7, [#allocation4]
    $region49: #{tpu_custom_call.1} parent=1 // pred_fallthru
      _
    // Predicated region
    $region50: #{tpu_custom_call.1} parent=1 // pred_check
      _
    $region51: #{tpu_custom_call.1} parent=1 // pred_check_branch
      %625 = sbr.rel (0) target = $region53
    $region52: #{tpu_custom_call.1} parent=1 // pred_region
      %626 = dma.done [#allocation4], 16
    $region53: #{tpu_custom_call.1} parent=1 // pred_fallthru
      _
    %627 = vsyncpa [#allocation3], 1
    %628 = vsyncpa [#allocation6], 1
    %629 = vsyncpa [#allocation9], 1
    %630 = vsyncpa [#allocation4], 1

</llo_original>
